<compile_context>
chip_gen: v6e
topology: v6e:2x2x1
jax: 0.10.0
libtpu: 0.0.40
codegen_flags: <defaults>
</compile_context>

<pallas_src>
import functools

import jax
import jax.numpy as jnp
from jax import lax
from jax.experimental import pallas as pl
from jax.experimental.pallas import tpu as pltpu


def _cdiv(a, b):
    return (a + b - 1) // b


def _sublane(dtype):
    """Dtype-specific sublane packing multiple: 8 f32, 16 bf16, 32 int8/fp8."""
    return max(8, 32 // jnp.dtype(dtype).itemsize)


def _tpu_caps():
    """(vmem_capacity_bytes, num_tensorcores) queried at trace time, with safe fallbacks."""
    vmem = 128 * 1024 * 1024
    cores = None
    try:
        info = pltpu.get_tpu_info()
        vmem = int(getattr(info, "vmem_capacity_bytes", vmem))
        for name in ("num_cores", "tensorcores_per_chip", "num_tensorcores",
                     "cores_per_chip"):
            v = getattr(info, name, None)
            if v:
                cores = int(v)
                break
    except Exception:
        pass
    if cores is None:
        # Heuristic: 64 MiB VMEM per TC => v7x (2 TCs); 128 MiB => v5e/v6e (1 TC).
        cores = 2 if vmem <= 64 * 1024 * 1024 else 1
    return vmem, cores


# ---------------------------------------------------------------------------
# Kernels
# ---------------------------------------------------------------------------
def _avg_kernel_whole_t(x_ref, o_ref, *, inv_t):
    # x_ref: (BN, T, C) — whole segment axis resident; o_ref: (BN, C).
    s = jnp.sum(x_ref[...], axis=1, dtype=jnp.float32)     # f32 accumulation
    o_ref[...] = (s * inv_t).astype(o_ref.dtype)


def _avg_kernel_tiled_t(x_ref, o_ref, acc_ref, *, t_total, t_block):
    # Grid: (N blocks, T blocks); T is the trailing reduction axis.
    k = pl.program_id(1)
    last = pl.num_programs(1) - 1

    @pl.when(k == 0)
    def _():
        acc_ref[...] = jnp.zeros_like(acc_ref)

    if t_total % t_block != 0:
        # Tail masking only on the (single) partial last T block; all other
        # steps take the mask-free accumulate path (no per-element iota/select).
        @pl.when(k != last)
        def _():
            acc_ref[...] += jnp.sum(x_ref[...], axis=1, dtype=jnp.float32)

        @pl.when(k == last)
        def _():
            x = x_ref[...]
            seg = k * t_block + lax.broadcasted_iota(jnp.int32, x.shape, 1)
            x = jnp.where(seg < t_total, x, jnp.zeros_like(x))
            acc_ref[...] += jnp.sum(x, axis=1, dtype=jnp.float32)
    else:
        acc_ref[...] += jnp.sum(x_ref[...], axis=1, dtype=jnp.float32)

    @pl.when(k == last)
    def _():
        o_ref[...] = (acc_ref[...] * (1.0 / t_total)).astype(o_ref.dtype)


# ---------------------------------------------------------------------------
# Block-size selection
# ---------------------------------------------------------------------------
def _choose_blocks(n, t, c, itemsize, target_bytes, sub, num_cores):
    """Pick (BN, TT) so the input tile is ~target_bytes and specs are legal."""
    row_bytes = t * c * itemsize
    if n <= sub:
        bn = n                                # full-N block is always legal
    else:
        bn_fit = max(sub, (target_bytes // max(row_bytes, 1)) // sub * sub)
        bn = min(bn_fit, _cdiv(n, sub) * sub)
        if num_cores > 1:
            # Keep >= num_cores N-grid steps on multi-TC parts (v7x megacore);
            # on 1-TC parts (v5e/v6e) skip the cap: fewer, larger steps win.
            bn_cap = max(sub, sub * _cdiv(_cdiv(n, num_cores), sub))
            bn = min(bn, bn_cap)
        bn = int(bn)

    if bn * row_bytes <= target_bytes or t <= sub:
        tt = t                                # whole T per step
    else:
        tt = max(sub, (target_bytes // max(bn * c * itemsize, 1)) // sub * sub)
        tt = int(min(tt, t))
        # Prefer a divisor of T (multiple of the sublane size) so the padded
        # tail — and its mask — vanish entirely, as long as it isn't tiny.
        best = 0
        d = tt - (tt % sub)
        while d >= sub:
            if t % d == 0:
                best = d
                break
            d -= sub
        if best >= max(sub, tt // 2):
            tt = best

    if num_cores > 1 and n > bn:
        # Prefer a grid_n that splits evenly across the TCs.
        grid_n = _cdiv(n, bn)
        if grid_n % num_cores != 0:
            cand = bn - sub
            while cand >= sub:
                if _cdiv(n, cand) % num_cores == 0:
                    bn = cand
                    break
                cand -= sub
    return int(bn), int(tt)


def _vmem_limit(in_tile_bytes, out_tile_bytes, acc_bytes, vmem_capacity):
    """Size the scoped-VMEM limit from the actual footprint, generation-aware."""
    footprint = (2 * in_tile_bytes          # double-buffered input
                 + 2 * out_tile_bytes       # double-buffered output
                 + acc_bytes                # f32 accumulator scratch (tiled path)
                 + 4 * 1024 * 1024)         # headroom
    if vmem_capacity <= 64 * 1024 * 1024:   # v7x: 64 MiB physical per TC
        cap = 48 * 1024 * 1024
    else:                                   # v5e/v6e: 128 MiB physical
        cap = 96 * 1024 * 1024
    return int(min(max(footprint, 16 * 1024 * 1024), cap))


# ---------------------------------------------------------------------------
# Pallas wrapper
# ---------------------------------------------------------------------------
def segment_consensus_avg(x, *, target_block_bytes=8 * 1024 * 1024):
    """Mean over dim=1 of (N, T, C) -> (N, C), computed in a Pallas TPU kernel."""
    if not jnp.issubdtype(x.dtype, jnp.floating):
        # torch.mean would also reject integer dtypes here.
        raise TypeError("avg consensus requires a floating-point input dtype")

    n, t, c = x.shape
    itemsize = jnp.dtype(x.dtype).itemsize
    vmem_cap, num_cores = _tpu_caps()
    sub = _sublane(x.dtype)

    bn, tt = _choose_blocks(n, t, c, itemsize, target_block_bytes, sub, num_cores)
    grid_n = _cdiv(n, bn)
    grid_t = _cdiv(t, tt)

    in_tile_bytes = bn * tt * c * itemsize
    out_tile_bytes = bn * c * itemsize
    acc_bytes = bn * c * 4 if grid_t > 1 else 0

    cost = pl.CostEstimate(
        flops=n * t * c,
        transcendentals=0,
        bytes_accessed=n * t * c * itemsize + n * c * itemsize,
    )
    compiler_params = pltpu.CompilerParams(
        dimension_semantics=("parallel",) if grid_t == 1
        else ("parallel", "arbitrary"),
        vmem_limit_bytes=_vmem_limit(in_tile_bytes, out_tile_bytes,
                                     acc_bytes, vmem_cap),
    )
    out_shape = jax.ShapeDtypeStruct((n, c), x.dtype)

    if grid_t == 1:
        kernel = functools.partial(_avg_kernel_whole_t, inv_t=1.0 / t)
        grid_spec = pltpu.PrefetchScalarGridSpec(
            num_scalar_prefetch=0,
            grid=(grid_n,),
            in_specs=[pl.BlockSpec((bn, t, c), lambda i: (i, 0, 0))],
            out_specs=pl.BlockSpec((bn, c), lambda i: (i, 0)),
        )
    else:
        kernel = functools.partial(_avg_kernel_tiled_t, t_total=t, t_block=tt)
        grid_spec = pltpu.PrefetchScalarGridSpec(
            num_scalar_prefetch=0,
            grid=(grid_n, grid_t),
            in_specs=[pl.BlockSpec((bn, tt, c), lambda i, k: (i, k, 0))],
            out_specs=pl.BlockSpec((bn, c), lambda i, k: (i, 0)),
            scratch_shapes=[pltpu.VMEM((bn, c), jnp.float32)],
        )

    return pl.pallas_call(
        kernel,
        out_shape=out_shape,
        grid_spec=grid_spec,
        compiler_params=compiler_params,
        cost_estimate=cost,
    )(x)


def consensus_module(x, consensus_type="avg", dim=1, *,
                     min_pallas_bytes=256 * 1024):
    """JAX equivalent of ConsensusModule.forward."""
    ctype = "identity" if consensus_type == "rnn" else consensus_type
    if ctype == "avg":
        assert dim == 1, "kernel implements the default dim=1 reduction"
        if x.size * jnp.dtype(x.dtype).itemsize < min_pallas_bytes:
            # Tiny input: pallas_call launch overhead dominates; XLA wins.
            return jnp.mean(x.astype(jnp.float32), axis=1).astype(x.dtype)
        return segment_consensus_avg(x)
    elif ctype == "identity":
        # output = input; then .squeeze(1) (no-op unless dim 1 has size 1)
        return jnp.squeeze(x, axis=1) if x.shape[1] == 1 else x
    else:
        # PyTorch would return None and crash on .squeeze(1); mirror by raising.
        raise ValueError(f"unknown consensus_type: {consensus_type}")


# ---------------------------------------------------------------------------
# Demo / correctness check
# ---------------------------------------------------------------------------
if __name__ == "__main__":
    key = jax.random.PRNGKey(0)
    k1, k2, k3, k4 = jax.random.split(key, 4)

    def ref_mean(x):
        return jnp.mean(x.astype(jnp.float32), axis=1).astype(x.dtype)

    # 1) Demo shape: (batch=2, segments=8, channels=128) -> single-block path.
    x1 = jax.random.normal(k1, (2, 8, 128), dtype=jnp.float32)
    o1 = jax.block_until_ready(segment_consensus_avg(x1))
    assert o1.shape == (2, 128)
    assert jnp.allclose(o1, ref_mean(x1), atol=1e-5, rtol=1e-5)

    # 2) Batched-N + tiled-T reduction path with a masked partial T tail.
    #    Tiny target_block_bytes just to exercise the tiled path at small shapes.
    x2 = jax.random.normal(k2, (18, 20, 128), dtype=jnp.float32)
    o2 = jax.block_until_ready(
        segment_consensus_avg(x2, target_block_bytes=8 * 1024))
    assert o2.shape == (18, 128)
    assert jnp.allclose(o2, ref_mean(x2), atol=1e-5, rtol=1e-5)

    # 3) bf16 input, sublane-dense (BN=16) output blocks, f32 accumulation.
    x3 = jax.random.normal(k3, (16, 8, 256), dtype=jnp.bfloat16)
    o3 = jax.block_until_ready(segment_consensus_avg(x3))
    assert o3.shape == (16, 256)
    assert jnp.allclose(o3.astype(jnp.float32),
                        ref_mean(x3).astype(jnp.float32),
                        atol=1e-2, rtol=1e-2)

    # 4) Tiled-T path where TT divides T -> mask-free accumulate on every step.
    x4 = jax.random.normal(k4, (10, 32, 128), dtype=jnp.float32)
    o4 = jax.block_until_ready(
        segment_consensus_avg(x4, target_block_bytes=16 * 1024))
    assert o4.shape == (10, 128)
    assert jnp.allclose(o4, ref_mean(x4), atol=1e-5, rtol=1e-5)

    # identity / rnn path (pure glue, no kernel)
    ident = consensus_module(x1, consensus_type="identity")
    assert ident.shape == x1.shape

    print("KERNEL_OK")
</pallas_src>

<mosaic_0001>
module attributes {stable_mosaic.version = 11 : i64} {
  func.func @_avg_kernel_whole_t(%arg0: i32, %arg1: memref<2x8x128xf32, #tpu.memory_space<vmem>>, %arg2: memref<2x128xf32, #tpu.memory_space<vmem>>) attributes {dimension_semantics = [#tpu.dimension_semantics<parallel>], iteration_bounds = array<i64: 1>, scalar_prefetch = 0 : i64, scratch_operands = 0 : i64, tpu.core_type = #tpu.core_type<tc>, window_params = [{transform_indices = @transform_0, window_bounds = array<i64: 2, 8, 128>}, {transform_indices = @transform_1, window_bounds = array<i64: 2, 128>}]} {
    %c0 = arith.constant 0 : index
    %c0_0 = arith.constant 0 : index
    %c0_1 = arith.constant 0 : index
    %0 = vector.load %arg1[%c0, %c0_0, %c0_1] : memref<2x8x128xf32, #tpu.memory_space<vmem>>, vector<2x8x128xf32>
    %cst = arith.constant dense<0.000000e+00> : vector<2x128xf32>
    %1 = vector.multi_reduction <add>, %0, %cst [1] : vector<2x8x128xf32> to vector<2x128xf32>
    %cst_2 = arith.constant 1.250000e-01 : f32
    %2 = vector.broadcast %cst_2 : f32 to vector<2x128xf32>
    %3 = arith.mulf %1, %2 : vector<2x128xf32>
    %c0_3 = arith.constant 0 : index
    %c0_4 = arith.constant 0 : index
    %4 = vector.load %arg2[%c0_3, %c0_4] : memref<2x128xf32, #tpu.memory_space<vmem>>, vector<2x128xf32>
    tpu.vector_store %arg2[%c0_3, %c0_4], %3 {strides = array<i32>} : memref<2x128xf32, #tpu.memory_space<vmem>>, vector<2x128xf32>,
    return
  }
  func.func @transform_0(%arg0: i32) -> (i32, i32, i32) {
    %c0_i32 = arith.constant 0 : i32
    %c0_i32_0 = arith.constant 0 : i32
    %c0_i32_1 = arith.constant 0 : i32
    return %arg0, %c0_i32, %c0_i32_0 : i32, i32, i32
  }
  func.func @transform_1(%arg0: i32) -> (i32, i32) {
    %c0_i32 = arith.constant 0 : i32
    %c0_i32_0 = arith.constant 0 : i32
    return %arg0, %c0_i32 : i32, i32
  }
}

</mosaic_0001>

<llo_original>
// kernel: tpu_custom_call.1
$region0: #{tpu_custom_call.1}
  #allocation0 [shape = 'u32[]', space=smem, size = 0x4, offset = 0x4, fixed_abs, tag = 'smem constant byte address 0x4 - core index']
  #allocation1 [shape = 'u32[144,128]{1,0:T(1,128)}', space=vmem, size = 0x12000, scoped, tag = 'internal scratch']
  %s0 = inlined_call_operand.hbm [shape: f32[2,8,128], index: 0, kind: input, shape index: {}]
  %s1 = inlined_call_operand.hbm [shape: f32[2,128], index: 1, kind: output, shape index: {}]
  %s2 = sld [smem:[#allocation0]]
  $region18: #{tpu_custom_call.1} parent=0
    _
  %s4 = ssub.s32 1, %s2
  %s5 = scalar_select 0, %s4, %s2
  $region1: #{tpu_custom_call.1} parent=0
    #allocation2 [shape = 'u8[8192]{0}', space=vmem, size = 0x2000, scoped, tag = 'input window, operand 0, single buffered']
    #allocation3 [shape = 's32[1]{0}', space=sflag, size = 0x4, scoped, tag = 'scoped memory for tpu_custom_call.1']
    #allocation4 [shape = 's32[1]{0}', space=sflag, size = 0x4, scoped, tag = 'scoped memory for tpu_custom_call.1']
    #allocation5 [shape = 'u8[1024]{0}', space=vmem, size = 0x400, scoped, tag = 'output window, operand 0, single buffered']
    %6 = vsyncpa [#allocation3], 0
    %7 = vsyncpa [#allocation4], 0
    // Predicated region
    $region2: #{tpu_custom_call.1} parent=1 // pred_check
      _
    $region3: #{tpu_custom_call.1} parent=1 // pred_check_branch
      %9 = sbr.rel (0) target = $region5
    $region4: #{tpu_custom_call.1} parent=1 // pred_region
      %s11 = ssub.s32 256, 256
      %12 = vsyncadd [#allocation3], %s11
      %s13 = sshll.u32 [#allocation2], 4
      %s14 = int_to_ptr.vmem [resolvable:$true] %s13
      %19 = dma.hbm_to_vmem [thread:$0]  %s0, 256, %s14, [#allocation3], 128, 128, 8
    $region5: #{tpu_custom_call.1} parent=1 // pred_fallthru
      _
    // Predicated region
    $region6: #{tpu_custom_call.1} parent=1 // pred_check
      _
    $region7: #{tpu_custom_call.1} parent=1 // pred_check_branch
      %21 = sbr.rel (0) target = $region9
    $region8: #{tpu_custom_call.1} parent=1 // pred_region
      %22 = dma.done [#allocation3], 256
    $region9: #{tpu_custom_call.1} parent=1 // pred_fallthru
      _
    %v23 = vld [vmem:[#allocation2] sm:$0xff]
    %v24 = vld [vmem:[#allocation2 + $0x8] sm:$0xff]
    %v25 = vrot.slane %v23, 4
    %v26 = vadd.f32 %v23, %v25
    %v27 = vrot.slane %v26, 2
    %v28 = vadd.f32 %v26, %v27
    %v29 = vrot.slane %v28, 1
    %v30 = vadd.f32 %v28, %v29
    %v31 = vrot.slane %v24, 4
    %v32 = vadd.f32 %v24, %v31
    %v33 = vrot.slane %v32, 2
    %v34 = vadd.f32 %v32, %v33
    %v35 = vrot.slane %v34, 1
    %v36 = vadd.f32 %v34, %v35
    %v37 = vmul.f32 %v30, 0.125
    %v38 = vmul.f32 %v36, 0.125
    %vm41 = vcmask 1041409
    %v42 = vsel %vm41, %v38, %v37
    %44 = vst [vmem:[#allocation5] sm:$0x3] %v42
    // Predicated region
    $region10: #{tpu_custom_call.1} parent=1 // pred_check
      _
    $region11: #{tpu_custom_call.1} parent=1 // pred_check_branch
      %46 = sbr.rel (0) target = $region13
    $region12: #{tpu_custom_call.1} parent=1 // pred_region
      %s48 = ssub.s32 32, 32
      %49 = vsyncadd [#allocation4], %s48
      %s51 = sshll.u32 [#allocation5], 4
      %s52 = int_to_ptr.vmem [resolvable:$true] %s51
      %54 = dma.vmem_to_hbm [thread:$0]  %s52, 32, %s1, [#allocation4]
    $region13: #{tpu_custom_call.1} parent=1 // pred_fallthru
      _
    // Predicated region
    $region14: #{tpu_custom_call.1} parent=1 // pred_check
      _
    $region15: #{tpu_custom_call.1} parent=1 // pred_check_branch
      %56 = sbr.rel (0) target = $region17
    $region16: #{tpu_custom_call.1} parent=1 // pred_region
      %57 = dma.done [#allocation4], 32
    $region17: #{tpu_custom_call.1} parent=1 // pred_fallthru
      _
    %58 = vsyncpa [#allocation3], 1
    %59 = vsyncpa [#allocation4], 1

</llo_original>
